<compile_context>
chip_gen: v6e
topology: v6e:2x2x1
jax: 0.10.0
libtpu: 0.0.40
codegen_flags: <defaults>
</compile_context>

<pallas_src>
import jax
import jax.numpy as jnp
from jax.experimental import pallas as pl
from jax.experimental.pallas import tpu as pltpu

_LANE = 128


def _round_up(x, m):
    return ((x + m - 1) // m) * m


def _target_out_block_bytes():
    """Per-generation outputs-block target: ~8 MiB on 64 MiB-VMEM parts (v7x),
    ~16 MiB on 128 MiB-VMEM parts (v5e/v6e)."""
    try:
        info = pltpu.get_tpu_info()
        vmem = getattr(info, "vmem_capacity_bytes", None)
        if vmem is not None and vmem >= (100 << 20):
            return 16 << 20
    except Exception:
        pass
    return 8 << 20


def _make_iou_kernel(H, C, TH, W, RG, n_tiles_h):
    """Per-tile partial-sum kernel.

    Block views:
      out_ref:  (1, C, TH, W)   predictions (producer dtype; cast per-vreg)
      lab_ref:  (1, TH, W)      int32 class map
      part_ref: (1, 1, 2RG, W)  float32; rows [0,RG)=inter, [RG,2RG)=sum(out)
    """

    def _rowgroup(out_ref, lab_ref, start, acc, valid_rows=None):
        acc_inter, acc_out = acc
        lab = lab_ref[0, pl.ds(start, RG), :]                 # 1 load, reused x C
        if valid_rows is not None:
            row = jax.lax.broadcasted_iota(jnp.int32, (RG, W), 0)
            row_ok = row < valid_rows
        for c in range(C):                                    # C small: static unroll
            x = out_ref[0, c, pl.ds(start, RG), :].astype(jnp.float32)
            if valid_rows is not None:
                x = jnp.where(row_ok, x, 0.0)
            acc_out = acc_out + x
            acc_inter = acc_inter + jnp.where(lab == c, x, 0.0)
        return acc_inter, acc_out

    def _accumulate(out_ref, lab_ref, rows):
        """Partials over the first `rows` (static python int) rows of the block."""
        n_full, rem = rows // RG, rows % RG
        acc = (jnp.zeros((RG, W), jnp.float32),
               jnp.zeros((RG, W), jnp.float32))

        def body(r, acc):
            start = pl.multiple_of(r * RG, RG)
            return _rowgroup(out_ref, lab_ref, start, acc)

        unroll = 2 if (n_full > 0 and n_full % 2 == 0) else 1
        acc = jax.lax.fori_loop(0, n_full, body, acc, unroll=unroll)
        if rem:
            # Tail rows: reads land in the block's sublane padding (in-bounds
            # of the VMEM allocation); the garbage rows are masked to zero.
            acc = _rowgroup(out_ref, lab_ref, n_full * RG, acc, valid_rows=rem)
        return acc

    def kernel(out_ref, lab_ref, part_ref):
        def emit(rows):
            acc_inter, acc_out = _accumulate(out_ref, lab_ref, rows)
            part_ref[0, 0, 0:RG, :] = acc_inter
            part_ref[0, 0, RG:2 * RG, :] = acc_out

        if H % TH == 0:                       # every H-tile is full (static)
            emit(TH)
        else:
            j = pl.program_id(0)
            last = n_tiles_h - 1

            @pl.when(j != last)
            def _():
                emit(TH)

            @pl.when(j == last)
            def _():
                emit(H - last * TH)           # static: valid rows in last tile

    return kernel


def iou_loss_forward(outputs, labels, smooth=1e-12, max_rows_per_block=None):
    """outputs: (B, C, H, W) float predictions; labels: (B, H, W) int class map.

    Assumes every label is a valid class id in [0, C) — the same assumption the
    PyTorch module makes (F.one_hot's inferred channel count must equal C).
    """
    B, C, H, W = outputs.shape
    assert labels.shape == (B, H, W)

    if labels.dtype != jnp.int32:
        labels = labels.astype(jnp.int32)     # tiny vs. the outputs traffic
    # TODO(synk): optional further win — int8 labels (C < 128) to cut label bytes 4x.

    itemsize = jnp.dtype(outputs.dtype).itemsize
    RG = 8 * max(1, 4 // itemsize)            # row-group: 8 f32 / 16 bf16 / 32 int8

    # Pick the H-tile so one outputs block hits the per-generation target;
    # VMEM cost is estimated with the lane-padded width.
    Wp = _round_up(W, _LANE)
    row_budget = max(1, _target_out_block_bytes() // max(1, C * Wp * itemsize))
    if max_rows_per_block is not None:        # test hook
        row_budget = min(row_budget, max_rows_per_block)
    if row_budget >= H:
        TH = H
    else:
        TH = min(H, max(RG, (row_budget // RG) * RG))
    n_tiles_h = pl.cdiv(H, TH)

    out_block_bytes = C * TH * Wp * itemsize
    lab_block_bytes = TH * Wp * 4
    part_block_bytes = 2 * RG * Wp * 4
    vmem_limit = 2 * (out_block_bytes + lab_block_bytes + part_block_bytes) + (4 << 20)
    vmem_limit = int(min(max(vmem_limit, 32 << 20), 120 << 20))

    cost = pl.CostEstimate(
        flops=4 * B * C * H * W,
        transcendentals=0,
        bytes_accessed=(B * C * H * W * itemsize)      # outputs (read once)
        + (B * H * W * 4)                              # labels
        + (n_tiles_h * B * part_block_bytes),          # packed partials
    )

    kernel = _make_iou_kernel(H, C, TH, W, RG, n_tiles_h)

    part = pl.pallas_call(
        kernel,
        out_shape=jax.ShapeDtypeStruct((n_tiles_h, B, 2 * RG, W), jnp.float32),
        grid_spec=pltpu.PrefetchScalarGridSpec(
            num_scalar_prefetch=0,
            grid=(n_tiles_h, B),               # large axis first: v7x 2-TC split
            in_specs=[
                pl.BlockSpec((1, C, TH, W), lambda j, b: (b, 0, j, 0)),
                pl.BlockSpec((1, TH, W), lambda j, b: (b, j, 0)),
            ],
            out_specs=pl.BlockSpec((1, 1, 2 * RG, W), lambda j, b: (j, b, 0, 0)),
        ),
        compiler_params=pltpu.CompilerParams(
            dimension_semantics=("parallel", "parallel"),
            vmem_limit_bytes=vmem_limit,
        ),
        cost_estimate=cost,
    )(outputs, labels)

    # Tiny epilogue reduction over the packed per-tile partials (better
    # summation accuracy than one running scalar, and no in-kernel XLU work).
    inter = jnp.sum(part[:, :, :RG, :])
    sum_out = jnp.sum(part[:, :, RG:, :])
    # sum(one_hot(labels)) == B*H*W exactly for labels in [0, C).
    # NOTE: f32 epilogue — exactness degrades past ~2^24 pixels, which matches
    # a float32 PyTorch run (a float64 run would differ at that scale).
    sum_lab = float(B * H * W)

    union = sum_out + sum_lab - inter
    iou = (inter + smooth) / (union + smooth)
    return {"total_loss": 1.0 - iou}


def _reference_loss(outputs, labels, smooth=1e-12):
    C = outputs.shape[1]
    onehot = jax.nn.one_hot(labels, C, dtype=jnp.float32).transpose(0, 3, 1, 2)
    o = outputs.astype(jnp.float32).reshape(-1)
    l = onehot.reshape(-1)
    inter = jnp.sum(o * l)
    union = jnp.sum(o + l) - inter
    return 1.0 - (inter + smooth) / (union + smooth)


if __name__ == "__main__":
    key = jax.random.PRNGKey(0)
    k1, k2, k3, k4 = jax.random.split(key, 4)

    # Case 1: small aligned shapes consistent with the module
    # (B=2, C=4, H=16, W=16); soft predictions in [0,1], labels cover 0..C-1.
    B, C, H, W = 2, 4, 16, 16
    outputs = jax.nn.softmax(jax.random.normal(k1, (B, C, H, W), jnp.float32), axis=1)
    labels = jax.random.randint(k2, (B, H, W), 0, C, dtype=jnp.int32)
    labels = labels.at[0, 0, :C].set(jnp.arange(C, dtype=jnp.int32))

    loss = jax.block_until_ready(iou_loss_forward(outputs, labels)["total_loss"])
    ref = _reference_loss(outputs, labels)
    assert jnp.allclose(loss, ref, atol=1e-5, rtol=1e-5), (loss, ref)

    # Case 2: ragged shapes (H, W not multiples of 8/128) with a forced small
    # H-tile, exercising the multi-tile + masked-tail kernel path.
    B2, C2, H2, W2 = 2, 3, 20, 24
    outputs2 = jax.nn.softmax(jax.random.normal(k3, (B2, C2, H2, W2), jnp.float32), axis=1)
    labels2 = jax.random.randint(k4, (B2, H2, W2), 0, C2, dtype=jnp.int32)
    labels2 = labels2.at[0, 0, :C2].set(jnp.arange(C2, dtype=jnp.int32))

    loss2 = jax.block_until_ready(
        iou_loss_forward(outputs2, labels2, max_rows_per_block=8)["total_loss"])
    ref2 = _reference_loss(outputs2, labels2)
    assert jnp.allclose(loss2, ref2, atol=1e-5, rtol=1e-5), (loss2, ref2)

    print("KERNEL_OK")
</pallas_src>

<mosaic_0001>
module attributes {stable_mosaic.version = 11 : i64} {
  func.func @kernel(%arg0: i32, %arg1: i32, %arg2: memref<1x4x16x16xf32, #tpu.memory_space<vmem>>, %arg3: memref<1x16x16xi32, #tpu.memory_space<vmem>>, %arg4: memref<1x1x16x16xf32, #tpu.memory_space<vmem>>) attributes {dimension_semantics = [#tpu.dimension_semantics<parallel>, #tpu.dimension_semantics<parallel>], iteration_bounds = array<i64: 1, 2>, scalar_prefetch = 0 : i64, scratch_operands = 0 : i64, tpu.core_type = #tpu.core_type<tc>, window_params = [{transform_indices = @transform_0, window_bounds = array<i64: 1, 4, 16, 16>}, {transform_indices = @transform_1, window_bounds = array<i64: 1, 16, 16>}, {transform_indices = @transform_2, window_bounds = array<i64: 1, 1, 16, 16>}]} {
    %cst = arith.constant 0.000000e+00 : f32
    %0 = vector.broadcast %cst : f32 to vector<8x16xf32>
    %cst_0 = arith.constant 0.000000e+00 : f32
    %1 = vector.broadcast %cst_0 : f32 to vector<8x16xf32>
    %c0_i32 = arith.constant 0 : i32
    %c8_i32 = arith.constant 8 : i32
    %2 = arith.muli %c0_i32, %c8_i32 : i32
    %3 = tpu.assume_multiple %2, 8 : i32
    %c0 = arith.constant 0 : index
    %4 = arith.index_cast %3 : i32 to index
    %c0_1 = arith.constant 0 : index
    %5 = vector.load %arg3[%c0, %4, %c0_1] : memref<1x16x16xi32, #tpu.memory_space<vmem>>, vector<1x8x16xi32>
    %6 = vector.shape_cast %5 : vector<1x8x16xi32> to vector<8x16xi32>
    %c0_2 = arith.constant 0 : index
    %c0_3 = arith.constant 0 : index
    %7 = arith.index_cast %3 : i32 to index
    %c0_4 = arith.constant 0 : index
    %8 = vector.load %arg2[%c0_2, %c0_3, %7, %c0_4] : memref<1x4x16x16xf32, #tpu.memory_space<vmem>>, vector<1x1x8x16xf32>
    %9 = vector.shape_cast %8 : vector<1x1x8x16xf32> to vector<8x16xf32>
    %10 = arith.addf %1, %9 : vector<8x16xf32>
    %c0_i32_5 = arith.constant 0 : i32
    %11 = vector.broadcast %c0_i32_5 : i32 to vector<8x16xi32>
    %12 = arith.cmpi eq, %6, %11 : vector<8x16xi32>
    %cst_6 = arith.constant 0.000000e+00 : f32
    %13 = vector.broadcast %cst_6 : f32 to vector<8x16xf32>
    %14 = arith.select %12, %9, %13 : vector<8x16xi1>, vector<8x16xf32>
    %15 = arith.addf %0, %14 : vector<8x16xf32>
    %c0_7 = arith.constant 0 : index
    %c1 = arith.constant 1 : index
    %16 = arith.index_cast %3 : i32 to index
    %c0_8 = arith.constant 0 : index
    %17 = vector.load %arg2[%c0_7, %c1, %16, %c0_8] : memref<1x4x16x16xf32, #tpu.memory_space<vmem>>, vector<1x1x8x16xf32>
    %18 = vector.shape_cast %17 : vector<1x1x8x16xf32> to vector<8x16xf32>
    %19 = arith.addf %10, %18 : vector<8x16xf32>
    %c1_i32 = arith.constant 1 : i32
    %20 = vector.broadcast %c1_i32 : i32 to vector<8x16xi32>
    %21 = arith.cmpi eq, %6, %20 : vector<8x16xi32>
    %cst_9 = arith.constant 0.000000e+00 : f32
    %22 = vector.broadcast %cst_9 : f32 to vector<8x16xf32>
    %23 = arith.select %21, %18, %22 : vector<8x16xi1>, vector<8x16xf32>
    %24 = arith.addf %15, %23 : vector<8x16xf32>
    %c0_10 = arith.constant 0 : index
    %c2 = arith.constant 2 : index
    %25 = arith.index_cast %3 : i32 to index
    %c0_11 = arith.constant 0 : index
    %26 = vector.load %arg2[%c0_10, %c2, %25, %c0_11] : memref<1x4x16x16xf32, #tpu.memory_space<vmem>>, vector<1x1x8x16xf32>
    %27 = vector.shape_cast %26 : vector<1x1x8x16xf32> to vector<8x16xf32>
    %28 = arith.addf %19, %27 : vector<8x16xf32>
    %c2_i32 = arith.constant 2 : i32
    %29 = vector.broadcast %c2_i32 : i32 to vector<8x16xi32>
    %30 = arith.cmpi eq, %6, %29 : vector<8x16xi32>
    %cst_12 = arith.constant 0.000000e+00 : f32
    %31 = vector.broadcast %cst_12 : f32 to vector<8x16xf32>
    %32 = arith.select %30, %27, %31 : vector<8x16xi1>, vector<8x16xf32>
    %33 = arith.addf %24, %32 : vector<8x16xf32>
    %c0_13 = arith.constant 0 : index
    %c3 = arith.constant 3 : index
    %34 = arith.index_cast %3 : i32 to index
    %c0_14 = arith.constant 0 : index
    %35 = vector.load %arg2[%c0_13, %c3, %34, %c0_14] : memref<1x4x16x16xf32, #tpu.memory_space<vmem>>, vector<1x1x8x16xf32>
    %36 = vector.shape_cast %35 : vector<1x1x8x16xf32> to vector<8x16xf32>
    %37 = arith.addf %28, %36 : vector<8x16xf32>
    %c3_i32 = arith.constant 3 : i32
    %38 = vector.broadcast %c3_i32 : i32 to vector<8x16xi32>
    %39 = arith.cmpi eq, %6, %38 : vector<8x16xi32>
    %cst_15 = arith.constant 0.000000e+00 : f32
    %40 = vector.broadcast %cst_15 : f32 to vector<8x16xf32>
    %41 = arith.select %39, %36, %40 : vector<8x16xi1>, vector<8x16xf32>
    %42 = arith.addf %33, %41 : vector<8x16xf32>
    %c1_i32_16 = arith.constant 1 : i32
    %c8_i32_17 = arith.constant 8 : i32
    %43 = arith.muli %c1_i32_16, %c8_i32_17 : i32
    %44 = tpu.assume_multiple %43, 8 : i32
    %c0_18 = arith.constant 0 : index
    %45 = arith.index_cast %44 : i32 to index
    %c0_19 = arith.constant 0 : index
    %46 = vector.load %arg3[%c0_18, %45, %c0_19] : memref<1x16x16xi32, #tpu.memory_space<vmem>>, vector<1x8x16xi32>
    %47 = vector.shape_cast %46 : vector<1x8x16xi32> to vector<8x16xi32>
    %c0_20 = arith.constant 0 : index
    %c0_21 = arith.constant 0 : index
    %48 = arith.index_cast %44 : i32 to index
    %c0_22 = arith.constant 0 : index
    %49 = vector.load %arg2[%c0_20, %c0_21, %48, %c0_22] : memref<1x4x16x16xf32, #tpu.memory_space<vmem>>, vector<1x1x8x16xf32>
    %50 = vector.shape_cast %49 : vector<1x1x8x16xf32> to vector<8x16xf32>
    %51 = arith.addf %37, %50 : vector<8x16xf32>
    %c0_i32_23 = arith.constant 0 : i32
    %52 = vector.broadcast %c0_i32_23 : i32 to vector<8x16xi32>
    %53 = arith.cmpi eq, %47, %52 : vector<8x16xi32>
    %cst_24 = arith.constant 0.000000e+00 : f32
    %54 = vector.broadcast %cst_24 : f32 to vector<8x16xf32>
    %55 = arith.select %53, %50, %54 : vector<8x16xi1>, vector<8x16xf32>
    %56 = arith.addf %42, %55 : vector<8x16xf32>
    %c0_25 = arith.constant 0 : index
    %c1_26 = arith.constant 1 : index
    %57 = arith.index_cast %44 : i32 to index
    %c0_27 = arith.constant 0 : index
    %58 = vector.load %arg2[%c0_25, %c1_26, %57, %c0_27] : memref<1x4x16x16xf32, #tpu.memory_space<vmem>>, vector<1x1x8x16xf32>
    %59 = vector.shape_cast %58 : vector<1x1x8x16xf32> to vector<8x16xf32>
    %60 = arith.addf %51, %59 : vector<8x16xf32>
    %c1_i32_28 = arith.constant 1 : i32
    %61 = vector.broadcast %c1_i32_28 : i32 to vector<8x16xi32>
    %62 = arith.cmpi eq, %47, %61 : vector<8x16xi32>
    %cst_29 = arith.constant 0.000000e+00 : f32
    %63 = vector.broadcast %cst_29 : f32 to vector<8x16xf32>
    %64 = arith.select %62, %59, %63 : vector<8x16xi1>, vector<8x16xf32>
    %65 = arith.addf %56, %64 : vector<8x16xf32>
    %c0_30 = arith.constant 0 : index
    %c2_31 = arith.constant 2 : index
    %66 = arith.index_cast %44 : i32 to index
    %c0_32 = arith.constant 0 : index
    %67 = vector.load %arg2[%c0_30, %c2_31, %66, %c0_32] : memref<1x4x16x16xf32, #tpu.memory_space<vmem>>, vector<1x1x8x16xf32>
    %68 = vector.shape_cast %67 : vector<1x1x8x16xf32> to vector<8x16xf32>
    %69 = arith.addf %60, %68 : vector<8x16xf32>
    %c2_i32_33 = arith.constant 2 : i32
    %70 = vector.broadcast %c2_i32_33 : i32 to vector<8x16xi32>
    %71 = arith.cmpi eq, %47, %70 : vector<8x16xi32>
    %cst_34 = arith.constant 0.000000e+00 : f32
    %72 = vector.broadcast %cst_34 : f32 to vector<8x16xf32>
    %73 = arith.select %71, %68, %72 : vector<8x16xi1>, vector<8x16xf32>
    %74 = arith.addf %65, %73 : vector<8x16xf32>
    %c0_35 = arith.constant 0 : index
    %c3_36 = arith.constant 3 : index
    %75 = arith.index_cast %44 : i32 to index
    %c0_37 = arith.constant 0 : index
    %76 = vector.load %arg2[%c0_35, %c3_36, %75, %c0_37] : memref<1x4x16x16xf32, #tpu.memory_space<vmem>>, vector<1x1x8x16xf32>
    %77 = vector.shape_cast %76 : vector<1x1x8x16xf32> to vector<8x16xf32>
    %78 = arith.addf %69, %77 : vector<8x16xf32>
    %c3_i32_38 = arith.constant 3 : i32
    %79 = vector.broadcast %c3_i32_38 : i32 to vector<8x16xi32>
    %80 = arith.cmpi eq, %47, %79 : vector<8x16xi32>
    %cst_39 = arith.constant 0.000000e+00 : f32
    %81 = vector.broadcast %cst_39 : f32 to vector<8x16xf32>
    %82 = arith.select %80, %77, %81 : vector<8x16xi1>, vector<8x16xf32>
    %83 = arith.addf %74, %82 : vector<8x16xf32>
    %c2_i32_40 = arith.constant 2 : i32
    %c0_41 = arith.constant 0 : index
    %c0_42 = arith.constant 0 : index
    %c0_43 = arith.constant 0 : index
    %c0_44 = arith.constant 0 : index
    %84 = vector.load %arg4[%c0_41, %c0_42, %c0_43, %c0_44] : memref<1x1x16x16xf32, #tpu.memory_space<vmem>>, vector<1x1x8x16xf32>
    %85 = vector.shape_cast %84 : vector<1x1x8x16xf32> to vector<8x16xf32>
    %86 = vector.shape_cast %83 : vector<8x16xf32> to vector<1x1x8x16xf32>
    tpu.vector_store %arg4[%c0_41, %c0_42, %c0_43, %c0_44], %86 {strides = array<i32>} : memref<1x1x16x16xf32, #tpu.memory_space<vmem>>, vector<1x1x8x16xf32>,
    %c0_45 = arith.constant 0 : index
    %c0_46 = arith.constant 0 : index
    %c8 = arith.constant 8 : index
    %c0_47 = arith.constant 0 : index
    %87 = vector.load %arg4[%c0_45, %c0_46, %c8, %c0_47] : memref<1x1x16x16xf32, #tpu.memory_space<vmem>>, vector<1x1x8x16xf32>
    %88 = vector.shape_cast %87 : vector<1x1x8x16xf32> to vector<8x16xf32>
    %89 = vector.shape_cast %78 : vector<8x16xf32> to vector<1x1x8x16xf32>
    tpu.vector_store %arg4[%c0_45, %c0_46, %c8, %c0_47], %89 {strides = array<i32>} : memref<1x1x16x16xf32, #tpu.memory_space<vmem>>, vector<1x1x8x16xf32>,
    return
  }
  func.func @transform_0(%arg0: i32, %arg1: i32) -> (i32, i32, i32, i32) {
    %c0_i32 = arith.constant 0 : i32
    %c0_i32_0 = arith.constant 0 : i32
    %c0_i32_1 = arith.constant 0 : i32
    return %arg1, %c0_i32, %arg0, %c0_i32_0 : i32, i32, i32, i32
  }
  func.func @transform_1(%arg0: i32, %arg1: i32) -> (i32, i32, i32) {
    %c0_i32 = arith.constant 0 : i32
    %c0_i32_0 = arith.constant 0 : i32
    return %arg1, %arg0, %c0_i32 : i32, i32, i32
  }
  func.func @transform_2(%arg0: i32, %arg1: i32) -> (i32, i32, i32, i32) {
    %c0_i32 = arith.constant 0 : i32
    %c0_i32_0 = arith.constant 0 : i32
    %c0_i32_1 = arith.constant 0 : i32
    return %arg0, %arg1, %c0_i32, %c0_i32_0 : i32, i32, i32, i32
  }
}

</mosaic_0001>

<llo_original>
// kernel: tpu_custom_call.1
$region0: #{tpu_custom_call.1}
  #allocation0 [shape = 'u32[]', space=smem, size = 0x4, offset = 0x4, fixed_abs, tag = 'smem constant byte address 0x4 - core index']
  #allocation1 [shape = 'u32[144,128]{1,0:T(1,128)}', space=vmem, size = 0x12000, scoped, tag = 'internal scratch']
  %s0 = inlined_call_operand.hbm [shape: f32[2,4,16,16], index: 0, kind: input, shape index: {}]
  %s1 = inlined_call_operand.hbm [shape: s32[2,16,16], index: 1, kind: input, shape index: {}]
  %s2 = inlined_call_operand.hbm [shape: f32[1,2,16,16], index: 2, kind: output, shape index: {}]
  %s3 = sld [smem:[#allocation0]]
  $region49: #{tpu_custom_call.1} parent=0
    _
  %s5 = ssub.s32 1, %s3
  %s6 = scalar_select 0, %s5, %s3
  $region1: #{tpu_custom_call.1} parent=0
    #allocation2 [shape = 'u8[65536]{0}', space=vmem, size = 0x10000, scoped, tag = 'input window, operand 0']
    #allocation3 [shape = 's32[2]{0}', space=sflag, size = 0x8, scoped, tag = 'scoped memory for tpu_custom_call.1']
    #allocation4 [shape = 's32[2]{0}', space=sflag, size = 0x8, scoped, tag = 'scoped memory for tpu_custom_call.1']
    #allocation5 [shape = 'u8[16384]{0}', space=vmem, size = 0x4000, scoped, tag = 'input window, operand 1']
    #allocation6 [shape = 's32[2]{0}', space=sflag, size = 0x8, scoped, tag = 'scoped memory for tpu_custom_call.1']
    #allocation7 [shape = 'u8[16384]{0}', space=vmem, size = 0x4000, scoped, tag = 'output window, operand 0']
    %7 = vsyncpa [#allocation3], 0
    %s8 = scalar_lea.sflag [#allocation3], 1
    %9 = vsyncpa %s8, 0
    %10 = vsyncpa [#allocation6], 0
    %s11 = scalar_lea.sflag [#allocation6], 1
    %12 = vsyncpa %s11, 0
    %13 = vsyncpa [#allocation4], 0
    %s14 = scalar_lea.sflag [#allocation4], 1
    %15 = vsyncpa %s14, 0
    loop: start=0, step=1, limit=4
    $region2: #{tpu_custom_call.1} parent=1 // loop_pre_header
      _
    $region3: #{tpu_custom_call.1} parent=1 // loop_header
      %s17 = sphi 0, %s21
      %p18 = scmp.ge.s32.totalorder %s17, 4
      %s24 = sphi 0, %s36
      %s25 = sphi 0, %s32
      %s26 = sphi 0, %s24
      %s27 = sphi 0, %s25
      %s28 = sphi 0, %s26
      %s29 = sphi 0, %s27
      %s41 = sphi 0, %s43
      %s44 = sphi 0, %s41
      %s45 = sphi 0, %s44
      %s61 = sphi 0, %s45
      %s69 = sphi 0, %s71
      %s72 = sphi 0, %s69
      %s73 = sphi 0, %s72
      %s89 = sphi 0, %s73
      %s97 = sphi 0, %s99
      %s100 = sphi 0, %s97
      %s101 = sphi 0, %s100
      %s117 = sphi 0, %s101
    $region4: #{tpu_custom_call.1} parent=1 // loop_header_branch
      %20 = sbr.rel (%p18) target = $region8
    $region5: #{tpu_custom_call.1} parent=1 // loop_body
      %s22 = ssub.s32 %s17, 1
      %s23 = ssub.s32 %s17, 2
      %s30 = sadd.s32 1, %s25
      %p31 = scmp.ge.s32.totalorder %s30, 2
      %s32 = scalar_select %p31, 0, %s30
      %s33 = sadd.s32 1, %s24
      %s34 = scalar_select %p31, %s33, %s24
      %p35 = scmp.ge.s32.totalorder %s34, 1
      %s36 = scalar_select %p35, 0, %s34
      %s37 = ssub.s32 %s25, %s32
      %s38 = ssub.s32 %s24, %s36
      %s39 = sor.u32 %s37, %s38
      %p40 = scmp.eq.s32.totalorder %s39, 0
      %s42 = sadd.s32 %s41, 1
      %s43 = scalar_select %p40, %s41, %s42
      %p46 = pneg %p40
      %p47 = scmp.eq.s32.totalorder %s17, 1
      %p48 = por %p46, %p47
      %p49 = scmp.ne.s32.totalorder %s41, %s44
      %p50 = scmp.eq.s32.totalorder %s17, 0
      %p51 = por %p49, %p50
      %p52 = scmp.ne.s32.totalorder %s41, %s44
      %p53 = scmp.eq.s32.totalorder %s22, 1
      %p54 = por %p52, %p53
      %p55 = scmp.ne.s32.totalorder %s44, %s45
      %p56 = scmp.eq.s32.totalorder %s22, 0
      %p57 = por %p55, %p56
      %p58 = scmp.ne.s32.totalorder %s44, %s45
      %p59 = scmp.eq.s32.totalorder %s23, 1
      %p60 = por %p58, %p59
      %p62 = scmp.ne.s32.totalorder %s45, %s61
      %p63 = scmp.eq.s32.totalorder %s23, 0
      %p64 = por %p62, %p63
      %s65 = ssub.s32 %s25, %s32
      %s66 = ssub.s32 %s24, %s36
      %s67 = sor.u32 %s65, %s66
      %p68 = scmp.eq.s32.totalorder %s67, 0
      %s70 = sadd.s32 %s69, 1
      %s71 = scalar_select %p68, %s69, %s70
      %p74 = pneg %p68
      %p75 = scmp.eq.s32.totalorder %s17, 1
      %p76 = por %p74, %p75
      %p77 = scmp.ne.s32.totalorder %s69, %s72
      %p78 = scmp.eq.s32.totalorder %s17, 0
      %p79 = por %p77, %p78
      %p80 = scmp.ne.s32.totalorder %s69, %s72
      %p81 = scmp.eq.s32.totalorder %s22, 1
      %p82 = por %p80, %p81
      %p83 = scmp.ne.s32.totalorder %s72, %s73
      %p84 = scmp.eq.s32.totalorder %s22, 0
      %p85 = por %p83, %p84
      %p86 = scmp.ne.s32.totalorder %s72, %s73
      %p87 = scmp.eq.s32.totalorder %s23, 1
      %p88 = por %p86, %p87
      %p90 = scmp.ne.s32.totalorder %s73, %s89
      %p91 = scmp.eq.s32.totalorder %s23, 0
      %p92 = por %p90, %p91
      %s93 = ssub.s32 %s24, %s36
      %s94 = ssub.s32 %s25, %s32
      %s95 = sor.u32 %s93, %s94
      %p96 = scmp.eq.s32.totalorder %s95, 0
      %s98 = sadd.s32 %s97, 1
      %s99 = scalar_select %p96, %s97, %s98
      %p102 = pneg %p96
      %p103 = scmp.eq.s32.totalorder %s17, 1
      %p104 = por %p102, %p103
      %p105 = scmp.ne.s32.totalorder %s97, %s100
      %p106 = scmp.eq.s32.totalorder %s17, 0
      %p107 = por %p105, %p106
      %p108 = scmp.ne.s32.totalorder %s97, %s100
      %p109 = scmp.eq.s32.totalorder %s22, 1
      %p110 = por %p108, %p109
      %p111 = scmp.ne.s32.totalorder %s100, %s101
      %p112 = scmp.eq.s32.totalorder %s22, 0
      %p113 = por %p111, %p112
      %p114 = scmp.ne.s32.totalorder %s100, %s101
      %p115 = scmp.eq.s32.totalorder %s23, 1
      %p116 = por %p114, %p115
      %p118 = scmp.ne.s32.totalorder %s101, %s117
      %p119 = scmp.eq.s32.totalorder %s23, 0
      %p120 = por %p118, %p119
      %p121 = scmp.le.s32.totalorder 1, %s17
      %p122 = scmp.lt.s32.totalorder %s17, 3
      %p123 = pnand %p121, %p122
      %p124 = pneg %p123
      // Predicated region
      $region9: #{tpu_custom_call.1} parent=5 // pred_check
        _
      $region10: #{tpu_custom_call.1} parent=5 // pred_check_branch
        %126 = sbr.rel (%p123) target = $region12
      $region11: #{tpu_custom_call.1} parent=5 // pred_region
        %s127 = ssub.s32 %s17, 1
      $region12: #{tpu_custom_call.1} parent=5 // pred_fallthru
        _
      %p128 = scmp.lt.s32.totalorder %s17, 2
      // Predicated region
      $region13: #{tpu_custom_call.1} parent=5 // pred_check
        %p129 = pneg %p128
      $region14: #{tpu_custom_call.1} parent=5 // pred_check_branch
        %131 = sbr.rel (%p129) target = $region16
      $region15: #{tpu_custom_call.1} parent=5 // pred_region
        // Predicated region
        $region17: #{tpu_custom_call.1} parent=15 // pred_check
          %p132 = pneg %p51
        $region18: #{tpu_custom_call.1} parent=15 // pred_check_branch
          %134 = sbr.rel (%p132) target = $region20
        $region19: #{tpu_custom_call.1} parent=15 // pred_region
          %s135 = sand.u32 %s41, 1
          %s136 = scalar_lea.sflag [#allocation3], %s135
          %s137 = sand.u32 %s41, 1
          %s138 = smul.addr %s137, 64
          %s139 = scalar_lea.vmem [#allocation2], %s138
          %s140 = smul.u32 2, %s24
          %s142 = ssub.s32 1024, 1024
          %143 = vsyncadd %s136, %s142
          %s144 = smul.addr %s25, 8
          %s145 = sadd.s32 %s140, %s144
          %s146 = smul.addr %s145, 128
          %s147 = scalar_lea.hbm %s0, %s146
          %s148 = sshll.u32 %s139, 4
          %s149 = int_to_ptr.vmem [resolvable:$true] %s148
          %154 = dma.hbm_to_vmem [thread:$0]  %s147, 1024, %s149, %s136, 128, 128, 8
        $region20: #{tpu_custom_call.1} parent=15 // pred_fallthru
          _
        // Predicated region
        $region21: #{tpu_custom_call.1} parent=15 // pred_check
          %p155 = pneg %p79
        $region22: #{tpu_custom_call.1} parent=15 // pred_check_branch
          %157 = sbr.rel (%p155) target = $region24
        $region23: #{tpu_custom_call.1} parent=15 // pred_region
          %s158 = sand.u32 %s69, 1
          %s159 = scalar_lea.sflag [#allocation6], %s158
          %s160 = sand.u32 %s69, 1
          %s161 = smul.addr %s160, 16
          %s162 = scalar_lea.vmem [#allocation5], %s161
          %s163 = smul.u32 2, %s24
          %s165 = ssub.s32 256, 256
          %166 = vsyncadd %s159, %s165
          %s167 = smul.addr %s25, 2
          %s168 = sadd.s32 %s163, %s167
          %s169 = smul.addr %s168, 128
          %s170 = scalar_lea.hbm %s1, %s169
          %s171 = sshll.u32 %s162, 4
          %s172 = int_to_ptr.vmem [resolvable:$true] %s171
          %177 = dma.hbm_to_vmem [thread:$0]  %s170, 256, %s172, %s159, 128, 128, 8
        $region24: #{tpu_custom_call.1} parent=15 // pred_fallthru
          _
      $region16: #{tpu_custom_call.1} parent=5 // pred_fallthru
        _
      %p178 = scmp.le.s32.totalorder 1, %s17
      %p179 = scmp.lt.s32.totalorder %s17, 3
      %p180 = pnand %p178, %p179
      %p181 = pneg %p180
      // Predicated region
      $region25: #{tpu_custom_call.1} parent=5 // pred_check
        _
      $region26: #{tpu_custom_call.1} parent=5 // pred_check_branch
        %183 = sbr.rel (%p180) target = $region28
      $region27: #{tpu_custom_call.1} parent=5 // pred_region
        %s184 = ssub.s32 %s17, 1
        %s185 = sand.u32 %s44, 1
        %s186 = scalar_lea.sflag [#allocation3], %s185
        %s187 = sand.u32 %s44, 1
        %s188 = smul.addr %s187, 64
        %s189 = scalar_lea.vmem [#allocation2], %s188
        // Predicated region
        $region29: #{tpu_custom_call.1} parent=27 // pred_check
          %p190 = pneg %p57
        $region30: #{tpu_custom_call.1} parent=27 // pred_check_branch
          %192 = sbr.rel (%p190) target = $region32
        $region31: #{tpu_custom_call.1} parent=27 // pred_region
          %193 = dma.done %s186, 1024
        $region32: #{tpu_custom_call.1} parent=27 // pred_fallthru
          _
        %s194 = sand.u32 %s72, 1
        %s195 = scalar_lea.sflag [#allocation6], %s194
        %s196 = sand.u32 %s72, 1
        %s197 = smul.addr %s196, 16
        %s198 = scalar_lea.vmem [#allocation5], %s197
        // Predicated region
        $region33: #{tpu_custom_call.1} parent=27 // pred_check
          %p199 = pneg %p85
        $region34: #{tpu_custom_call.1} parent=27 // pred_check_branch
          %201 = sbr.rel (%p199) target = $region36
        $region35: #{tpu_custom_call.1} parent=27 // pred_region
          %202 = dma.done %s195, 256
        $region36: #{tpu_custom_call.1} parent=27 // pred_fallthru
          _
        %s203 = sand.u32 %s44, 1
        %s204 = scalar_lea.sflag [#allocation3], %s203
        %s205 = sand.u32 %s44, 1
        %s206 = smul.addr %s205, 64
        %s207 = scalar_lea.vmem [#allocation2], %s206
        %p208 = pneg %p57
        %p209 = pneg %p54
        %s210 = sand.u32 %s72, 1
        %s211 = scalar_lea.sflag [#allocation6], %s210
        %s212 = sand.u32 %s72, 1
        %s213 = smul.addr %s212, 16
        %s214 = scalar_lea.vmem [#allocation5], %s213
        %p215 = pneg %p85
        %p216 = pneg %p82
        %p217 = pneg %p113
        %p218 = pneg %p110
        %s219 = sand.u32 %s100, 1
        %s220 = scalar_lea.sflag [#allocation4], %s219
        %s221 = sand.u32 %s100, 1
        %s222 = smul.addr %s221, 16
        %s223 = scalar_lea.vmem [#allocation7], %s222
        %s224 = smul.u32 2, %s26
        %s225 = smul.u32 2, %s26
        %v226 = vld [vmem:[%s198] sm:$0xff]
        %v227 = vld [vmem:[%s189] sm:$0xff]
        %v228 = vadd.f32 %v227, 0.0
        %vm229 = vcmp.eq.s32.totalorder %v226, 0
        %v230 = vsel %vm229, %v227, 0.0
        %v231 = vadd.f32 %v230, 0.0
        %s232 = sadd.s32 0, 16
        %s233 = scalar_lea.vmem %s189, %s232 [#allocation2]
        %v234 = vld [vmem:[%s233] sm:$0xff]
        %v235 = vadd.f32 %v228, %v234
        %vm236 = vcmp.eq.s32.totalorder %v226, 1
        %v237 = vsel %vm236, %v234, 0.0
        %v238 = vadd.f32 %v231, %v237
        %s239 = sadd.s32 0, 32
        %s240 = scalar_lea.vmem %s189, %s239 [#allocation2]
        %v241 = vld [vmem:[%s240] sm:$0xff]
        %v242 = vadd.f32 %v235, %v241
        %vm243 = vcmp.eq.s32.totalorder %v226, 2
        %v244 = vsel %vm243, %v241, 0.0
        %v245 = vadd.f32 %v238, %v244
        %s246 = sadd.s32 0, 48
        %s247 = scalar_lea.vmem %s189, %s246 [#allocation2]
        %v248 = vld [vmem:[%s247] sm:$0xff]
        %v249 = vadd.f32 %v242, %v248
        %vm250 = vcmp.eq.s32.totalorder %v226, 3
        %v251 = vsel %vm250, %v248, 0.0
        %v252 = vadd.f32 %v245, %v251
        %s253 = scalar_lea.vmem %s198, 8 [#allocation5]
        %v254 = vld [vmem:[%s253] sm:$0xff]
        %s255 = scalar_lea.vmem %s189, 8 [#allocation2]
        %v256 = vld [vmem:[%s255] sm:$0xff]
        %v257 = vadd.f32 %v249, %v256
        %vm258 = vcmp.eq.s32.totalorder %v254, 0
        %v259 = vsel %vm258, %v256, 0.0
        %v260 = vadd.f32 %v252, %v259
        %s261 = sadd.s32 8, 16
        %s262 = scalar_lea.vmem %s189, %s261 [#allocation2]
        %v263 = vld [vmem:[%s262] sm:$0xff]
        %v264 = vadd.f32 %v257, %v263
        %vm265 = vcmp.eq.s32.totalorder %v254, 1
        %v266 = vsel %vm265, %v263, 0.0
        %v267 = vadd.f32 %v260, %v266
        %s268 = sadd.s32 8, 32
        %s269 = scalar_lea.vmem %s189, %s268 [#allocation2]
        %v270 = vld [vmem:[%s269] sm:$0xff]
        %v271 = vadd.f32 %v264, %v270
        %vm272 = vcmp.eq.s32.totalorder %v254, 2
        %v273 = vsel %vm272, %v270, 0.0
        %v274 = vadd.f32 %v267, %v273
        %s275 = sadd.s32 8, 48
        %s276 = scalar_lea.vmem %s189, %s275 [#allocation2]
        %v277 = vld [vmem:[%s276] sm:$0xff]
        %v278 = vadd.f32 %v271, %v277
        %vm279 = vcmp.eq.s32.totalorder %v254, 3
        %v280 = vsel %vm279, %v277, 0.0
        %v281 = vadd.f32 %v274, %v280
        %vm282 = vcmask 130048
        %283 = vst.msk [vmem:[%s223] sm:$0xff] %vm282, %v281
        %284 = vst.msk [vmem:[%s223 + $0x8] sm:$0xff] %vm282, %v278
        %s285 = sand.u32 %s100, 1
        %s286 = scalar_lea.sflag [#allocation4], %s285
        %s287 = sand.u32 %s100, 1
        %s288 = smul.addr %s287, 16
        %s289 = scalar_lea.vmem [#allocation7], %s288
        // Predicated region
        $region37: #{tpu_custom_call.1} parent=27 // pred_check
          %p290 = pneg %p110
        $region38: #{tpu_custom_call.1} parent=27 // pred_check_branch
          %292 = sbr.rel (%p290) target = $region40
        $region39: #{tpu_custom_call.1} parent=27 // pred_region
          %s294 = ssub.s32 256, 256
          %295 = vsyncadd %s286, %s294
          %s296 = smul.addr %s27, 2
          %s297 = smul.addr %s26, 4
          %s298 = sadd.s32 %s296, %s297
          %s299 = smul.addr %s298, 128
          %s300 = scalar_lea.hbm %s2, %s299
          %s301 = sshll.u32 %s289, 4
          %s302 = int_to_ptr.vmem [resolvable:$true] %s301
          %307 = dma.vmem_to_hbm [thread:$0]  %s302, 256, %s300, %s286, 128, 128, 8
        $region40: #{tpu_custom_call.1} parent=27 // pred_fallthru
          _
      $region28: #{tpu_custom_call.1} parent=5 // pred_fallthru
        _
      %p308 = scmp.le.s32.totalorder 2, %s17
      // Predicated region
      $region41: #{tpu_custom_call.1} parent=5 // pred_check
        %p309 = pneg %p308
      $region42: #{tpu_custom_call.1} parent=5 // pred_check_branch
        %311 = sbr.rel (%p309) target = $region44
      $region43: #{tpu_custom_call.1} parent=5 // pred_region
        %s312 = ssub.s32 %s17, 2
        // Predicated region
        $region45: #{tpu_custom_call.1} parent=43 // pred_check
          %p313 = pneg %p116
        $region46: #{tpu_custom_call.1} parent=43 // pred_check_branch
          %315 = sbr.rel (%p313) target = $region48
        $region47: #{tpu_custom_call.1} parent=43 // pred_region
          %s316 = sand.u32 %s101, 1
          %s317 = scalar_lea.sflag [#allocation4], %s316
          %s318 = sand.u32 %s101, 1
          %s319 = smul.addr %s318, 16
          %s320 = scalar_lea.vmem [#allocation7], %s319
          %321 = dma.done %s317, 256
        $region48: #{tpu_custom_call.1} parent=43 // pred_fallthru
          _
      $region44: #{tpu_custom_call.1} parent=5 // pred_fallthru
        _
    $region6: #{tpu_custom_call.1} parent=1 // loop_footer
      %s21 = sadd.s32 1, %s17
    $region7: #{tpu_custom_call.1} parent=1 // loop_footer_branch
      %16 = sbr.rel target = $region3
    $region8: #{tpu_custom_call.1} parent=1 // loop_exit
      _
    %322 = vsyncpa [#allocation3], 1
    %s323 = scalar_lea.sflag [#allocation3], 1
    %324 = vsyncpa %s323, 1
    %325 = vsyncpa [#allocation6], 1
    %s326 = scalar_lea.sflag [#allocation6], 1
    %327 = vsyncpa %s326, 1
    %328 = vsyncpa [#allocation4], 1
    %s329 = scalar_lea.sflag [#allocation4], 1
    %330 = vsyncpa %s329, 1

</llo_original>
